<compile_context>
chip_gen: v5e
topology: v5e:2x2
jax: 0.10.0
libtpu: 0.0.40
codegen_flags: <defaults>
</compile_context>

<pallas_src>
import jax
import jax.numpy as jnp
from jax.experimental import pallas as pl
from jax.experimental.pallas import tpu as pltpu

N_NODES = 25
N_PAD = 32          # nodes padded to a sublane multiple so M = Bb * 32


# ----------------------------- fused kernel ---------------------------------
def _fused_kernel(a_ref, x_ref, wg1_ref, wc1_ref, pk1_ref, wg2_ref, pk2_ref,
                  wpool_ref, wfc_ref, bfc_ref, out_ref):
    # Layout: activations are (Bb*32, T*C); row index = bb*32 + n, col = t*C + c.
    x = x_ref[...]                          # (Bb*32, T*Cin)
    a = a_ref[...]                          # (Bb*32, Bb*32) block-diag over batch
    pk1 = pk1_ref[...]                      # (4, T*16): bg1, bc1, bn1_scale, bn1_shift
    pk2 = pk2_ref[...]                      # (3, T*32): bg2, bn2_scale, bn2_shift(+pool bias)

    # convert1 / gnn1 per-frame projections (block-diag kron weights, full-lane outputs)
    pre1 = jnp.dot(x, wg1_ref[...], preferred_element_type=jnp.float32)    # X @ Wg1
    conv1 = jnp.dot(x, wc1_ref[...], preferred_element_type=jnp.float32) + pk1[1:2, :]

    # gnn_transformer1 stand-in: relu(A @ (X @ Wg1) + bg1)
    agg1 = jnp.dot(a, pre1, preferred_element_type=jnp.float32)
    h1 = jnp.maximum(agg1 + pk1[0:1, :], 0.0)

    # residual add, BatchNorm2d(16) folded affine, ReLU, dropout = identity
    last = h1 + conv1
    r1 = jnp.maximum(last * pk1[2:3, :] + pk1[3:4, :], 0.0)                # (Bb*32, T*16)

    # gnn_transformer2 stand-in: relu(A @ (r1 @ Wg2) + bg2), 16 -> 32
    pre2 = jnp.dot(r1, wg2_ref[...], preferred_element_type=jnp.float32)   # (Bb*32, T*32)
    agg2 = jnp.dot(a, pre2, preferred_element_type=jnp.float32)
    h2 = jnp.maximum(agg2 + pk2[0:1, :], 0.0)

    # pool_result: Linear(num_nodes -> 1) over the node axis, block-diag over batch.
    # Result (Bb, T*32) is already in flatten(1, 2) order (col = t*32 + c).
    pooled = jnp.dot(wpool_ref[...], h2, preferred_element_type=jnp.float32)

    # BatchNorm1d(32*T) folded affine (pool bias folded into shift), ReLU, fc head
    r2 = jnp.maximum(pooled * pk2[1:2, :] + pk2[2:3, :], 0.0)
    out_ref[0] = (jnp.dot(r2, wfc_ref[...], preferred_element_type=jnp.float32)
                  + bfc_ref[...])                                          # (Bb, nc_pad)


# ----------------------------- wrapper ---------------------------------------
def spatiotemp_forward(features, A, params, block_b=None):
    B, T, N, Cin = features.shape
    nc = params["w_fc"].shape[1]
    f32 = jnp.float32
    NP = N_PAD
    TC1, TC2 = 16 * T, 32 * T
    nc_pad = pl.cdiv(nc, 128) * 128         # lane-dense output width

    # Batch block: target M = Bb*32 = 256 (full MXU pass) while keeping >= 2 grid
    # steps (both v7x TensorCores).  On v5e, block_b=4 (M=128) already fills the MXU.
    if block_b is None:
        Bb = max(1, min(8, pl.cdiv(B, 2)))
    else:
        Bb = int(block_b)
    grid_len = pl.cdiv(B, Bb)
    B_pad = grid_len * Bb

    # Nodes-major, node-padded, batch-merged layout:
    #   x_merged[b*32 + n, t*Cin + ci] = features[b, t, n, ci]
    x_nt = jnp.transpose(features.astype(f32), (0, 2, 1, 3)).reshape(B, N, T * Cin)
    x_nt = jnp.pad(x_nt, ((0, B_pad - B), (0, NP - N), (0, 0)))
    x_merged = x_nt.reshape(B_pad * NP, T * Cin)

    # Node-padded adjacency, block-diagonal over the Bb batch elements per step.
    A_pad = jnp.zeros((NP, NP), f32).at[:N, :N].set(A.astype(f32))
    A_blk = jnp.kron(jnp.eye(Bb, dtype=f32), A_pad)                        # (Bb*32, Bb*32)

    # Per-frame (block-diagonal) projection weights.
    eye_t = jnp.eye(T, dtype=f32)
    wg1_big = jnp.kron(eye_t, params["wg1"].astype(f32))                   # (T*Cin, T*16)
    wc1_big = jnp.kron(eye_t, params["wc1"].astype(f32))                   # (T*Cin, T*16)
    wg2_big = jnp.kron(eye_t, params["wg2"].astype(f32))                   # (T*16,  T*32)

    # Packed per-channel vectors (tiled over t to match the (*, T*C) layout).
    pack1 = jnp.concatenate([
        jnp.tile(params["bg1"], (1, T)),
        jnp.tile(params["bc1"], (1, T)),
        jnp.tile(params["bn1_scale"], (1, T)),
        jnp.tile(params["bn1_shift"], (1, T)),
    ], axis=0).astype(f32)                                                 # (4, T*16)

    # Fold the pool bias into the BN2 shift: s2*(z + b_pool) + b2 == s2*z + (s2*b_pool + b2)
    bn2_shift_f = params["bn2_shift"] + params["bn2_scale"] * params["b_pool"][0, 0]
    pack2 = jnp.concatenate([
        jnp.tile(params["bg2"], (1, T)),
        params["bn2_scale"],
        bn2_shift_f,
    ], axis=0).astype(f32)                                                 # (3, T*32)

    # Pool weights: zero on padded nodes, block-diagonal over the batch block.
    wpool_row = jnp.zeros((1, NP), f32).at[0, :N].set(params["w_pool"][0].astype(f32))
    wpool_blk = jnp.kron(jnp.eye(Bb, dtype=f32), wpool_row)                # (Bb, Bb*32)

    # Lane-padded classifier head (padded columns stay exactly zero).
    wfc = jnp.zeros((TC2, nc_pad), f32).at[:, :nc].set(params["w_fc"].astype(f32))
    bfc = jnp.zeros((1, nc_pad), f32).at[:, :nc].set(params["b_fc"].astype(f32))

    out = pl.pallas_call(
        _fused_kernel,
        out_shape=jax.ShapeDtypeStruct((grid_len, Bb, nc_pad), f32),
        grid=(grid_len,),
        in_specs=[
            pl.BlockSpec((Bb * NP, Bb * NP), lambda i: (0, 0)),   # A (block-diag over batch)
            pl.BlockSpec((Bb * NP, T * Cin), lambda i: (i, 0)),   # features (batch-merged)
            pl.BlockSpec((T * Cin, TC1), lambda i: (0, 0)),       # Wg1 block-diag
            pl.BlockSpec((T * Cin, TC1), lambda i: (0, 0)),       # Wc1 block-diag
            pl.BlockSpec((4, TC1), lambda i: (0, 0)),             # bg1/bc1/bn1 pack
            pl.BlockSpec((TC1, TC2), lambda i: (0, 0)),           # Wg2 block-diag
            pl.BlockSpec((3, TC2), lambda i: (0, 0)),             # bg2/bn2 pack
            pl.BlockSpec((Bb, Bb * NP), lambda i: (0, 0)),        # pool weights (block-diag)
            pl.BlockSpec((TC2, nc_pad), lambda i: (0, 0)),        # fc weight (lane-padded)
            pl.BlockSpec((1, nc_pad), lambda i: (0, 0)),          # fc bias   (lane-padded)
        ],
        out_specs=pl.BlockSpec((1, Bb, nc_pad), lambda i: (i, 0, 0)),
        compiler_params=pltpu.CompilerParams(dimension_semantics=("parallel",)),
    )(A_blk, x_merged, wg1_big, wc1_big, pack1, wg2_big, pack2,
      wpool_blk, wfc, bfc)

    return out.reshape(B_pad, nc_pad)[:B, :nc]


# ----------------------------- deterministic params --------------------------
def init_params(key, in_dim, time_dim, num_classes):
    ks = jax.random.split(key, 5)

    def glorot(k, shape):
        fan_in, fan_out = shape
        lim = (6.0 / (fan_in + fan_out)) ** 0.5
        return jax.random.uniform(k, shape, jnp.float32, -lim, lim)

    eps = 1e-5
    bn_scale = 1.0 / jnp.sqrt(1.0 + eps)   # gamma=1, beta=0, mean=0, var=1 at init
    p = {}
    p["wg1"] = glorot(ks[0], (in_dim, 16))
    p["bg1"] = jnp.zeros((1, 16), jnp.float32)
    p["wc1"] = glorot(ks[1], (in_dim, 16))
    p["bc1"] = jnp.zeros((1, 16), jnp.float32)
    p["bn1_scale"] = jnp.full((1, 16), bn_scale, jnp.float32)
    p["bn1_shift"] = jnp.zeros((1, 16), jnp.float32)
    p["wg2"] = glorot(ks[2], (16, 32))
    p["bg2"] = jnp.zeros((1, 32), jnp.float32)
    p["w_pool"] = glorot(ks[3], (1, N_NODES))
    p["b_pool"] = jnp.zeros((1, 1), jnp.float32)
    p["bn2_scale"] = jnp.full((1, 32 * time_dim), bn_scale, jnp.float32)
    p["bn2_shift"] = jnp.zeros((1, 32 * time_dim), jnp.float32)
    p["w_fc"] = glorot(ks[4], (32 * time_dim, num_classes))
    p["b_fc"] = jnp.zeros((1, num_classes), jnp.float32)
    return p


# ----------------------------- pure-JAX reference ----------------------------
def reference_forward(features, A, p):
    B, T, N, Cin = features.shape
    x = features
    agg1 = jnp.einsum("nm,btmc->btnc", A, x)
    h1 = jax.nn.relu(agg1 @ p["wg1"] + p["bg1"][0])
    last = h1 + (x @ p["wc1"] + p["bc1"][0])
    r = jax.nn.relu(last * p["bn1_scale"][0] + p["bn1_shift"][0])
    agg2 = jnp.einsum("nm,btmc->btnc", A, r)
    h2 = jax.nn.relu(agg2 @ p["wg2"] + p["bg2"][0])
    pooled = jnp.einsum("btnc,n->btc", h2, p["w_pool"][0]) + p["b_pool"][0, 0]
    z = pooled.reshape(B, T * 32)
    r2 = jax.nn.relu(z * p["bn2_scale"][0] + p["bn2_shift"][0])
    return r2 @ p["w_fc"] + p["b_fc"][0]


if __name__ == "__main__":
    T, N, Cin, num_classes = 8, N_NODES, 4, 5

    key = jax.random.PRNGKey(0)
    ka, kp, kf1, kf2 = jax.random.split(key, 4)

    A_raw = jax.random.uniform(ka, (N, N), dtype=jnp.float32)
    A = (A_raw + A_raw.T) * 0.5 + jnp.eye(N, dtype=jnp.float32)
    A = A / jnp.sum(A, axis=1, keepdims=True)          # row-normalized adjacency

    params = init_params(kp, Cin, T, num_classes)

    # Small case (B=2): Bb=1, grid=2 (keeps two parallel steps).
    feats_small = jax.random.normal(kf1, (2, T, N, Cin), dtype=jnp.float32)
    out_small = jax.block_until_ready(spatiotemp_forward(feats_small, A, params))
    ref_small = reference_forward(feats_small, A, params)
    assert out_small.shape == (2, num_classes)
    assert jnp.allclose(out_small, ref_small, atol=1e-4, rtol=1e-4), \
        "Pallas output != reference (B=2)"

    # Batch-blocked case (B=18): Bb=8 (MXU M=256), grid=3, batch padding exercised.
    feats_big = jax.random.normal(kf2, (18, T, N, Cin), dtype=jnp.float32)
    out_big = jax.block_until_ready(spatiotemp_forward(feats_big, A, params))
    ref_big = reference_forward(feats_big, A, params)
    assert out_big.shape == (18, num_classes)
    assert jnp.allclose(out_big, ref_big, atol=1e-4, rtol=1e-4), \
        "Pallas output != reference (B=18)"

    print("KERNEL_OK")
</pallas_src>

<mosaic_0001>
module attributes {stable_mosaic.version = 11 : i64} {
  func.func @_fused_kernel(%arg0: i32, %arg1: memref<32x32xf32, #tpu.memory_space<vmem>>, %arg2: memref<32x32xf32, #tpu.memory_space<vmem>>, %arg3: memref<32x128xf32, #tpu.memory_space<vmem>>, %arg4: memref<32x128xf32, #tpu.memory_space<vmem>>, %arg5: memref<4x128xf32, #tpu.memory_space<vmem>>, %arg6: memref<128x256xf32, #tpu.memory_space<vmem>>, %arg7: memref<3x256xf32, #tpu.memory_space<vmem>>, %arg8: memref<1x32xf32, #tpu.memory_space<vmem>>, %arg9: memref<256x128xf32, #tpu.memory_space<vmem>>, %arg10: memref<1x128xf32, #tpu.memory_space<vmem>>, %arg11: memref<1x1x128xf32, #tpu.memory_space<vmem>>) attributes {dimension_semantics = [#tpu.dimension_semantics<parallel>], iteration_bounds = array<i64: 2>, scalar_prefetch = 0 : i64, scratch_operands = 0 : i64, tpu.core_type = #tpu.core_type<tc>, window_params = [{pipeline_mode = #tpu.pipeline_mode<synchronous>, transform_indices = @transform_0, window_bounds = array<i64: 32, 32>}, {transform_indices = @transform_1, window_bounds = array<i64: 32, 32>}, {pipeline_mode = #tpu.pipeline_mode<synchronous>, transform_indices = @transform_2, window_bounds = array<i64: 32, 128>}, {pipeline_mode = #tpu.pipeline_mode<synchronous>, transform_indices = @transform_3, window_bounds = array<i64: 32, 128>}, {pipeline_mode = #tpu.pipeline_mode<synchronous>, transform_indices = @transform_4, window_bounds = array<i64: 4, 128>}, {pipeline_mode = #tpu.pipeline_mode<synchronous>, transform_indices = @transform_5, window_bounds = array<i64: 128, 256>}, {pipeline_mode = #tpu.pipeline_mode<synchronous>, transform_indices = @transform_6, window_bounds = array<i64: 3, 256>}, {pipeline_mode = #tpu.pipeline_mode<synchronous>, transform_indices = @transform_7, window_bounds = array<i64: 1, 32>}, {pipeline_mode = #tpu.pipeline_mode<synchronous>, transform_indices = @transform_8, window_bounds = array<i64: 256, 128>}, {pipeline_mode = #tpu.pipeline_mode<synchronous>, transform_indices = @transform_9, window_bounds = array<i64: 1, 128>}, {transform_indices = @transform_10, window_bounds = array<i64: 1, 1, 128>}]} {
    %c0 = arith.constant 0 : index
    %c0_0 = arith.constant 0 : index
    %0 = vector.load %arg2[%c0, %c0_0] : memref<32x32xf32, #tpu.memory_space<vmem>>, vector<32x32xf32>
    %c0_1 = arith.constant 0 : index
    %c0_2 = arith.constant 0 : index
    %1 = vector.load %arg1[%c0_1, %c0_2] : memref<32x32xf32, #tpu.memory_space<vmem>>, vector<32x32xf32>
    %c0_3 = arith.constant 0 : index
    %c0_4 = arith.constant 0 : index
    %2 = vector.load %arg5[%c0_3, %c0_4] : memref<4x128xf32, #tpu.memory_space<vmem>>, vector<4x128xf32>
    %c0_5 = arith.constant 0 : index
    %c0_6 = arith.constant 0 : index
    %3 = vector.load %arg7[%c0_5, %c0_6] : memref<3x256xf32, #tpu.memory_space<vmem>>, vector<3x256xf32>
    %c0_7 = arith.constant 0 : index
    %c0_8 = arith.constant 0 : index
    %4 = vector.load %arg3[%c0_7, %c0_8] : memref<32x128xf32, #tpu.memory_space<vmem>>, vector<32x128xf32>
    %cst = arith.constant dense<0.000000e+00> : vector<32x128xf32>
    %5 = tpu.matmul %0, %4, %cst {dimension_numbers = #tpu.dot_dimension_numbers<[1], [0], [0], [1], [0, 0, 1, 1], [], []>} : vector<32x32xf32>, vector<32x128xf32>, vector<32x128xf32> -> vector<32x128xf32>
    %c0_9 = arith.constant 0 : index
    %c0_10 = arith.constant 0 : index
    %6 = vector.load %arg4[%c0_9, %c0_10] : memref<32x128xf32, #tpu.memory_space<vmem>>, vector<32x128xf32>
    %cst_11 = arith.constant dense<0.000000e+00> : vector<32x128xf32>
    %7 = tpu.matmul %0, %6, %cst_11 {dimension_numbers = #tpu.dot_dimension_numbers<[1], [0], [0], [1], [0, 0, 1, 1], [], []>} : vector<32x32xf32>, vector<32x128xf32>, vector<32x128xf32> -> vector<32x128xf32>
    %8 = vector.extract_strided_slice %2 {offsets = [1, 0], sizes = [1, 128], strides = [1, 1]} : vector<4x128xf32> to vector<1x128xf32>
    %9 = vector.broadcast %8 : vector<1x128xf32> to vector<32x128xf32>
    %10 = arith.addf %7, %9 : vector<32x128xf32>
    %cst_12 = arith.constant dense<0.000000e+00> : vector<32x128xf32>
    %11 = tpu.matmul %1, %5, %cst_12 {dimension_numbers = #tpu.dot_dimension_numbers<[1], [0], [0], [1], [0, 0, 1, 1], [], []>} : vector<32x32xf32>, vector<32x128xf32>, vector<32x128xf32> -> vector<32x128xf32>
    %12 = vector.extract_strided_slice %2 {offsets = [0, 0], sizes = [1, 128], strides = [1, 1]} : vector<4x128xf32> to vector<1x128xf32>
    %13 = vector.broadcast %12 : vector<1x128xf32> to vector<32x128xf32>
    %14 = arith.addf %11, %13 : vector<32x128xf32>
    %cst_13 = arith.constant 0.000000e+00 : f32
    %15 = vector.broadcast %cst_13 : f32 to vector<32x128xf32>
    %16 = arith.maximumf %14, %15 : vector<32x128xf32>
    %17 = arith.addf %16, %10 : vector<32x128xf32>
    %18 = vector.extract_strided_slice %2 {offsets = [2, 0], sizes = [1, 128], strides = [1, 1]} : vector<4x128xf32> to vector<1x128xf32>
    %19 = vector.broadcast %18 : vector<1x128xf32> to vector<32x128xf32>
    %20 = arith.mulf %17, %19 : vector<32x128xf32>
    %21 = vector.extract_strided_slice %2 {offsets = [3, 0], sizes = [1, 128], strides = [1, 1]} : vector<4x128xf32> to vector<1x128xf32>
    %22 = vector.broadcast %21 : vector<1x128xf32> to vector<32x128xf32>
    %23 = arith.addf %20, %22 : vector<32x128xf32>
    %cst_14 = arith.constant 0.000000e+00 : f32
    %24 = vector.broadcast %cst_14 : f32 to vector<32x128xf32>
    %25 = arith.maximumf %23, %24 : vector<32x128xf32>
    %c0_15 = arith.constant 0 : index
    %c0_16 = arith.constant 0 : index
    %26 = vector.load %arg6[%c0_15, %c0_16] : memref<128x256xf32, #tpu.memory_space<vmem>>, vector<128x256xf32>
    %cst_17 = arith.constant dense<0.000000e+00> : vector<32x256xf32>
    %27 = tpu.matmul %25, %26, %cst_17 {dimension_numbers = #tpu.dot_dimension_numbers<[1], [0], [0], [1], [0, 0, 1, 1], [], []>} : vector<32x128xf32>, vector<128x256xf32>, vector<32x256xf32> -> vector<32x256xf32>
    %cst_18 = arith.constant dense<0.000000e+00> : vector<32x256xf32>
    %28 = tpu.matmul %1, %27, %cst_18 {dimension_numbers = #tpu.dot_dimension_numbers<[1], [0], [0], [1], [0, 0, 1, 1], [], []>} : vector<32x32xf32>, vector<32x256xf32>, vector<32x256xf32> -> vector<32x256xf32>
    %29 = vector.extract_strided_slice %3 {offsets = [0, 0], sizes = [1, 256], strides = [1, 1]} : vector<3x256xf32> to vector<1x256xf32>
    %30 = vector.broadcast %29 : vector<1x256xf32> to vector<32x256xf32>
    %31 = arith.addf %28, %30 : vector<32x256xf32>
    %cst_19 = arith.constant 0.000000e+00 : f32
    %32 = vector.broadcast %cst_19 : f32 to vector<32x256xf32>
    %33 = arith.maximumf %31, %32 : vector<32x256xf32>
    %c0_20 = arith.constant 0 : index
    %c0_21 = arith.constant 0 : index
    %34 = vector.load %arg8[%c0_20, %c0_21] : memref<1x32xf32, #tpu.memory_space<vmem>>, vector<1x32xf32>
    %cst_22 = arith.constant dense<0.000000e+00> : vector<1x256xf32>
    %35 = tpu.matmul %34, %33, %cst_22 {dimension_numbers = #tpu.dot_dimension_numbers<[1], [0], [0], [1], [0, 0, 1, 1], [], []>} : vector<1x32xf32>, vector<32x256xf32>, vector<1x256xf32> -> vector<1x256xf32>
    %36 = vector.extract_strided_slice %3 {offsets = [1, 0], sizes = [1, 256], strides = [1, 1]} : vector<3x256xf32> to vector<1x256xf32>
    %37 = arith.mulf %35, %36 : vector<1x256xf32>
    %38 = vector.extract_strided_slice %3 {offsets = [2, 0], sizes = [1, 256], strides = [1, 1]} : vector<3x256xf32> to vector<1x256xf32>
    %39 = arith.addf %37, %38 : vector<1x256xf32>
    %cst_23 = arith.constant 0.000000e+00 : f32
    %40 = vector.broadcast %cst_23 : f32 to vector<1x256xf32>
    %41 = arith.maximumf %39, %40 : vector<1x256xf32>
    %c0_24 = arith.constant 0 : index
    %c0_25 = arith.constant 0 : index
    %42 = vector.load %arg9[%c0_24, %c0_25] : memref<256x128xf32, #tpu.memory_space<vmem>>, vector<256x128xf32>
    %cst_26 = arith.constant dense<0.000000e+00> : vector<1x128xf32>
    %43 = tpu.matmul %41, %42, %cst_26 {dimension_numbers = #tpu.dot_dimension_numbers<[1], [0], [0], [1], [0, 0, 1, 1], [], []>} : vector<1x256xf32>, vector<256x128xf32>, vector<1x128xf32> -> vector<1x128xf32>
    %c0_27 = arith.constant 0 : index
    %c0_28 = arith.constant 0 : index
    %44 = vector.load %arg10[%c0_27, %c0_28] : memref<1x128xf32, #tpu.memory_space<vmem>>, vector<1x128xf32>
    %45 = arith.addf %43, %44 : vector<1x128xf32>
    %c0_29 = arith.constant 0 : index
    %c0_30 = arith.constant 0 : index
    %c0_31 = arith.constant 0 : index
    %46 = vector.load %arg11[%c0_29, %c0_30, %c0_31] : memref<1x1x128xf32, #tpu.memory_space<vmem>>, vector<1x1x128xf32>
    %47 = vector.shape_cast %46 : vector<1x1x128xf32> to vector<1x128xf32>
    %48 = vector.shape_cast %45 : vector<1x128xf32> to vector<1x1x128xf32>
    tpu.vector_store %arg11[%c0_29, %c0_30, %c0_31], %48 {strides = array<i32>} : memref<1x1x128xf32, #tpu.memory_space<vmem>>, vector<1x1x128xf32>,
    return
  }
  func.func @transform_0(%arg0: i32) -> (i32, i32) {
    %c0_i32 = arith.constant 0 : i32
    %c0_i32_0 = arith.constant 0 : i32
    %c0_i32_1 = arith.constant 0 : i32
    return %c0_i32, %c0_i32_0 : i32, i32
  }
  func.func @transform_1(%arg0: i32) -> (i32, i32) {
    %c0_i32 = arith.constant 0 : i32
    %c0_i32_0 = arith.constant 0 : i32
    return %arg0, %c0_i32 : i32, i32
  }
  func.func @transform_2(%arg0: i32) -> (i32, i32) {
    %c0_i32 = arith.constant 0 : i32
    %c0_i32_0 = arith.constant 0 : i32
    %c0_i32_1 = arith.constant 0 : i32
    return %c0_i32, %c0_i32_0 : i32, i32
  }
  func.func @transform_3(%arg0: i32) -> (i32, i32) {
    %c0_i32 = arith.constant 0 : i32
    %c0_i32_0 = arith.constant 0 : i32
    %c0_i32_1 = arith.constant 0 : i32
    return %c0_i32, %c0_i32_0 : i32, i32
  }
  func.func @transform_4(%arg0: i32) -> (i32, i32) {
    %c0_i32 = arith.constant 0 : i32
    %c0_i32_0 = arith.constant 0 : i32
    %c0_i32_1 = arith.constant 0 : i32
    return %c0_i32, %c0_i32_0 : i32, i32
  }
  func.func @transform_5(%arg0: i32) -> (i32, i32) {
    %c0_i32 = arith.constant 0 : i32
    %c0_i32_0 = arith.constant 0 : i32
    %c0_i32_1 = arith.constant 0 : i32
    return %c0_i32, %c0_i32_0 : i32, i32
  }
  func.func @transform_6(%arg0: i32) -> (i32, i32) {
    %c0_i32 = arith.constant 0 : i32
    %c0_i32_0 = arith.constant 0 : i32
    %c0_i32_1 = arith.constant 0 : i32
    return %c0_i32, %c0_i32_0 : i32, i32
  }
  func.func @transform_7(%arg0: i32) -> (i32, i32) {
    %c0_i32 = arith.constant 0 : i32
    %c0_i32_0 = arith.constant 0 : i32
    %c0_i32_1 = arith.constant 0 : i32
    return %c0_i32, %c0_i32_0 : i32, i32
  }
  func.func @transform_8(%arg0: i32) -> (i32, i32) {
    %c0_i32 = arith.constant 0 : i32
    %c0_i32_0 = arith.constant 0 : i32
    %c0_i32_1 = arith.constant 0 : i32
    return %c0_i32, %c0_i32_0 : i32, i32
  }
  func.func @transform_9(%arg0: i32) -> (i32, i32) {
    %c0_i32 = arith.constant 0 : i32
    %c0_i32_0 = arith.constant 0 : i32
    %c0_i32_1 = arith.constant 0 : i32
    return %c0_i32, %c0_i32_0 : i32, i32
  }
  func.func @transform_10(%arg0: i32) -> (i32, i32, i32) {
    %c0_i32 = arith.constant 0 : i32
    %c0_i32_0 = arith.constant 0 : i32
    %c0_i32_1 = arith.constant 0 : i32
    return %arg0, %c0_i32, %c0_i32_0 : i32, i32, i32
  }
}

</mosaic_0001>

<llo_original>
// kernel: tpu_custom_call.1
$region0: #{tpu_custom_call.1}
  #allocation0 [shape = 'u32[]', space=smem, size = 0x4, offset = 0x4, fixed_abs, tag = 'smem constant byte address 0x4 - core index']
  #allocation1 [shape = 'u32[72,128]{1,0:T(1,128)}', space=vmem, size = 0x9000, scoped, tag = 'internal scratch']
  %s0 = inlined_call_operand.vmem [shape: f32[32,32], index: 0, kind: input, shape index: {}]
  %s1 = inlined_call_operand.vmem [shape: f32[64,32], index: 1, kind: input, shape index: {}]
  %s2 = inlined_call_operand.vmem [shape: f32[32,128], index: 2, kind: input, shape index: {}]
  %s3 = inlined_call_operand.vmem [shape: f32[32,128], index: 3, kind: input, shape index: {}]
  %s4 = inlined_call_operand.hbm [shape: f32[4,128], index: 4, kind: input, shape index: {}]
  %s5 = inlined_call_operand.hbm [shape: f32[128,256], index: 5, kind: input, shape index: {}]
  %s6 = inlined_call_operand.hbm [shape: f32[3,256], index: 6, kind: input, shape index: {}]
  %s7 = inlined_call_operand.vmem [shape: f32[1,32], index: 7, kind: input, shape index: {}]
  %s8 = inlined_call_operand.hbm [shape: f32[256,128], index: 8, kind: input, shape index: {}]
  %s9 = inlined_call_operand.vmem [shape: f32[1,128], index: 9, kind: input, shape index: {}]
  %s10 = inlined_call_operand.hbm [shape: f32[2,1,128], index: 10, kind: output, shape index: {}]
  %s11 = sld [smem:[#allocation0]]
  $region89: #{tpu_custom_call.1} parent=0
    _
  %s13 = ssub.s32 1, %s11
  %s14 = scalar_select 0, %s13, %s11
  $region1: #{tpu_custom_call.1} parent=0
    #allocation2 [shape = 'u8[2048]{0}', space=vmem, size = 0x800, scoped, tag = 'input window, operand 4, single buffered']
    #allocation3 [shape = 's32[2]{0}', space=sflag, size = 0x8, scoped, tag = 'scoped memory for tpu_custom_call.1']
    #allocation4 [shape = 's32[2]{0}', space=sflag, size = 0x8, scoped, tag = 'scoped memory for tpu_custom_call.1']
    #allocation5 [shape = 'u8[131072]{0}', space=vmem, size = 0x20000, scoped, tag = 'input window, operand 5, single buffered']
    #allocation6 [shape = 's32[1]{0}', space=sflag, size = 0x4, scoped, tag = 'scoped memory for tpu_custom_call.1']
    #allocation7 [shape = 'u8[4096]{0}', space=vmem, size = 0x1000, scoped, tag = 'input window, operand 6, single buffered']
    #allocation8 [shape = 'u8[131072]{0}', space=vmem, size = 0x20000, scoped, tag = 'input window, operand 8, single buffered']
    #allocation9 [shape = 's32[1]{0}', space=sflag, size = 0x4, scoped, tag = 'scoped memory for tpu_custom_call.1']
    #allocation10 [shape = 'u8[1024]{0}', space=vmem, size = 0x400, scoped, tag = 'output window, operand 0']
    %15 = vsyncpa [#allocation3], 0
    %16 = vsyncpa [#allocation6], 0
    %17 = vsyncpa [#allocation9], 0
    %18 = vsyncpa [#allocation4], 0
    %s19 = scalar_lea.sflag [#allocation4], 1
    %20 = vsyncpa %s19, 0
    loop: start=0, step=1, limit=4
    $region2: #{tpu_custom_call.1} parent=1 // loop_pre_header
      _
    $region3: #{tpu_custom_call.1} parent=1 // loop_header
      %s22 = sphi 0, %s26
      %p23 = scmp.ge.s32.totalorder %s22, 4
      %s30 = sphi 0, %s30
      %s32 = sphi 0, %s30
      %s33 = sphi 0, %s32
      %s47 = sphi 0, %s33
      %s53 = sphi 0, %s55
      %s56 = sphi 0, %s53
      %s57 = sphi 0, %s56
      %s73 = sphi 0, %s57
      %s77 = sphi 0, %s77
      %s79 = sphi 0, %s77
      %s80 = sphi 0, %s79
      %s94 = sphi 0, %s80
      %s98 = sphi 0, %s98
      %s100 = sphi 0, %s98
      %s101 = sphi 0, %s100
      %s115 = sphi 0, %s101
      %s119 = sphi 0, %s119
      %s121 = sphi 0, %s119
      %s122 = sphi 0, %s121
      %s136 = sphi 0, %s122
      %s140 = sphi 0, %s140
      %s142 = sphi 0, %s140
      %s143 = sphi 0, %s142
      %s157 = sphi 0, %s143
      %s161 = sphi 0, %s161
      %s163 = sphi 0, %s161
      %s164 = sphi 0, %s163
      %s178 = sphi 0, %s164
      %s182 = sphi 0, %s182
      %s184 = sphi 0, %s182
      %s185 = sphi 0, %s184
      %s199 = sphi 0, %s185
      %s203 = sphi 0, %s203
      %s205 = sphi 0, %s203
      %s206 = sphi 0, %s205
      %s220 = sphi 0, %s206
      %s224 = sphi 0, %s224
      %s226 = sphi 0, %s224
      %s227 = sphi 0, %s226
      %s241 = sphi 0, %s227
      %s247 = sphi 0, %s249
      %s250 = sphi 0, %s247
      %s251 = sphi 0, %s250
      %s267 = sphi 0, %s251
    $region4: #{tpu_custom_call.1} parent=1 // loop_header_branch
      %25 = sbr.rel (%p23) target = $region8
    $region5: #{tpu_custom_call.1} parent=1 // loop_body
      %s27 = ssub.s32 %s22, 1
      %s28 = ssub.s32 %s22, 2
      %s29 = sadd.s32 %s22, 1
      %s31 = sadd.s32 %s30, 1
      %p34 = scmp.eq.s32.totalorder %s22, 1
      %p35 = scmp.ne.s32.totalorder %s30, %s32
      %p36 = scmp.eq.s32.totalorder %s22, 0
      %p37 = por %p35, %p36
      %p38 = scmp.ne.s32.totalorder %s30, %s32
      %p39 = scmp.eq.s32.totalorder %s27, 1
      %p40 = por %p38, %p39
      %p41 = scmp.ne.s32.totalorder %s32, %s33
      %p42 = scmp.eq.s32.totalorder %s27, 0
      %p43 = por %p41, %p42
      %p44 = scmp.ne.s32.totalorder %s32, %s33
      %p45 = scmp.eq.s32.totalorder %s28, 1
      %p46 = por %p44, %p45
      %p48 = scmp.ne.s32.totalorder %s33, %s47
      %p49 = scmp.eq.s32.totalorder %s28, 0
      %p50 = por %p48, %p49
      %s51 = ssub.s32 %s22, %s29
      %p52 = scmp.eq.s32.totalorder %s51, 0
      %s54 = sadd.s32 %s53, 1
      %s55 = scalar_select %p52, %s53, %s54
      %p58 = pneg %p52
      %p59 = scmp.eq.s32.totalorder %s22, 1
      %p60 = por %p58, %p59
      %p61 = scmp.ne.s32.totalorder %s53, %s56
      %p62 = scmp.eq.s32.totalorder %s22, 0
      %p63 = por %p61, %p62
      %p64 = scmp.ne.s32.totalorder %s53, %s56
      %p65 = scmp.eq.s32.totalorder %s27, 1
      %p66 = por %p64, %p65
      %p67 = scmp.ne.s32.totalorder %s56, %s57
      %p68 = scmp.eq.s32.totalorder %s27, 0
      %p69 = por %p67, %p68
      %p70 = scmp.ne.s32.totalorder %s56, %s57
      %p71 = scmp.eq.s32.totalorder %s28, 1
      %p72 = por %p70, %p71
      %p74 = scmp.ne.s32.totalorder %s57, %s73
      %p75 = scmp.eq.s32.totalorder %s28, 0
      %p76 = por %p74, %p75
      %s78 = sadd.s32 %s77, 1
      %p81 = scmp.eq.s32.totalorder %s22, 1
      %p82 = scmp.ne.s32.totalorder %s77, %s79
      %p83 = scmp.eq.s32.totalorder %s22, 0
      %p84 = por %p82, %p83
      %p85 = scmp.ne.s32.totalorder %s77, %s79
      %p86 = scmp.eq.s32.totalorder %s27, 1
      %p87 = por %p85, %p86
      %p88 = scmp.ne.s32.totalorder %s79, %s80
      %p89 = scmp.eq.s32.totalorder %s27, 0
      %p90 = por %p88, %p89
      %p91 = scmp.ne.s32.totalorder %s79, %s80
      %p92 = scmp.eq.s32.totalorder %s28, 1
      %p93 = por %p91, %p92
      %p95 = scmp.ne.s32.totalorder %s80, %s94
      %p96 = scmp.eq.s32.totalorder %s28, 0
      %p97 = por %p95, %p96
      %s99 = sadd.s32 %s98, 1
      %p102 = scmp.eq.s32.totalorder %s22, 1
      %p103 = scmp.ne.s32.totalorder %s98, %s100
      %p104 = scmp.eq.s32.totalorder %s22, 0
      %p105 = por %p103, %p104
      %p106 = scmp.ne.s32.totalorder %s98, %s100
      %p107 = scmp.eq.s32.totalorder %s27, 1
      %p108 = por %p106, %p107
      %p109 = scmp.ne.s32.totalorder %s100, %s101
      %p110 = scmp.eq.s32.totalorder %s27, 0
      %p111 = por %p109, %p110
      %p112 = scmp.ne.s32.totalorder %s100, %s101
      %p113 = scmp.eq.s32.totalorder %s28, 1
      %p114 = por %p112, %p113
      %p116 = scmp.ne.s32.totalorder %s101, %s115
      %p117 = scmp.eq.s32.totalorder %s28, 0
      %p118 = por %p116, %p117
      %s120 = sadd.s32 %s119, 1
      %p123 = scmp.eq.s32.totalorder %s22, 1
      %p124 = scmp.ne.s32.totalorder %s119, %s121
      %p125 = scmp.eq.s32.totalorder %s22, 0
      %p126 = por %p124, %p125
      %p127 = scmp.ne.s32.totalorder %s119, %s121
      %p128 = scmp.eq.s32.totalorder %s27, 1
      %p129 = por %p127, %p128
      %p130 = scmp.ne.s32.totalorder %s121, %s122
      %p131 = scmp.eq.s32.totalorder %s27, 0
      %p132 = por %p130, %p131
      %p133 = scmp.ne.s32.totalorder %s121, %s122
      %p134 = scmp.eq.s32.totalorder %s28, 1
      %p135 = por %p133, %p134
      %p137 = scmp.ne.s32.totalorder %s122, %s136
      %p138 = scmp.eq.s32.totalorder %s28, 0
      %p139 = por %p137, %p138
      %s141 = sadd.s32 %s140, 1
      %p144 = scmp.eq.s32.totalorder %s22, 1
      %p145 = scmp.ne.s32.totalorder %s140, %s142
      %p146 = scmp.eq.s32.totalorder %s22, 0
      %p147 = por %p145, %p146
      %p148 = scmp.ne.s32.totalorder %s140, %s142
      %p149 = scmp.eq.s32.totalorder %s27, 1
      %p150 = por %p148, %p149
      %p151 = scmp.ne.s32.totalorder %s142, %s143
      %p152 = scmp.eq.s32.totalorder %s27, 0
      %p153 = por %p151, %p152
      %p154 = scmp.ne.s32.totalorder %s142, %s143
      %p155 = scmp.eq.s32.totalorder %s28, 1
      %p156 = por %p154, %p155
      %p158 = scmp.ne.s32.totalorder %s143, %s157
      %p159 = scmp.eq.s32.totalorder %s28, 0
      %p160 = por %p158, %p159
      %s162 = sadd.s32 %s161, 1
      %p165 = scmp.eq.s32.totalorder %s22, 1
      %p166 = scmp.ne.s32.totalorder %s161, %s163
      %p167 = scmp.eq.s32.totalorder %s22, 0
      %p168 = por %p166, %p167
      %p169 = scmp.ne.s32.totalorder %s161, %s163
      %p170 = scmp.eq.s32.totalorder %s27, 1
      %p171 = por %p169, %p170
      %p172 = scmp.ne.s32.totalorder %s163, %s164
      %p173 = scmp.eq.s32.totalorder %s27, 0
      %p174 = por %p172, %p173
      %p175 = scmp.ne.s32.totalorder %s163, %s164
      %p176 = scmp.eq.s32.totalorder %s28, 1
      %p177 = por %p175, %p176
      %p179 = scmp.ne.s32.totalorder %s164, %s178
      %p180 = scmp.eq.s32.totalorder %s28, 0
      %p181 = por %p179, %p180
      %s183 = sadd.s32 %s182, 1
      %p186 = scmp.eq.s32.totalorder %s22, 1
      %p187 = scmp.ne.s32.totalorder %s182, %s184
      %p188 = scmp.eq.s32.totalorder %s22, 0
      %p189 = por %p187, %p188
      %p190 = scmp.ne.s32.totalorder %s182, %s184
      %p191 = scmp.eq.s32.totalorder %s27, 1
      %p192 = por %p190, %p191
      %p193 = scmp.ne.s32.totalorder %s184, %s185
      %p194 = scmp.eq.s32.totalorder %s27, 0
      %p195 = por %p193, %p194
      %p196 = scmp.ne.s32.totalorder %s184, %s185
      %p197 = scmp.eq.s32.totalorder %s28, 1
      %p198 = por %p196, %p197
      %p200 = scmp.ne.s32.totalorder %s185, %s199
      %p201 = scmp.eq.s32.totalorder %s28, 0
      %p202 = por %p200, %p201
      %s204 = sadd.s32 %s203, 1
      %p207 = scmp.eq.s32.totalorder %s22, 1
      %p208 = scmp.ne.s32.totalorder %s203, %s205
      %p209 = scmp.eq.s32.totalorder %s22, 0
      %p210 = por %p208, %p209
      %p211 = scmp.ne.s32.totalorder %s203, %s205
      %p212 = scmp.eq.s32.totalorder %s27, 1
      %p213 = por %p211, %p212
      %p214 = scmp.ne.s32.totalorder %s205, %s206
      %p215 = scmp.eq.s32.totalorder %s27, 0
      %p216 = por %p214, %p215
      %p217 = scmp.ne.s32.totalorder %s205, %s206
      %p218 = scmp.eq.s32.totalorder %s28, 1
      %p219 = por %p217, %p218
      %p221 = scmp.ne.s32.totalorder %s206, %s220
      %p222 = scmp.eq.s32.totalorder %s28, 0
      %p223 = por %p221, %p222
      %s225 = sadd.s32 %s224, 1
      %p228 = scmp.eq.s32.totalorder %s22, 1
      %p229 = scmp.ne.s32.totalorder %s224, %s226
      %p230 = scmp.eq.s32.totalorder %s22, 0
      %p231 = por %p229, %p230
      %p232 = scmp.ne.s32.totalorder %s224, %s226
      %p233 = scmp.eq.s32.totalorder %s27, 1
      %p234 = por %p232, %p233
      %p235 = scmp.ne.s32.totalorder %s226, %s227
      %p236 = scmp.eq.s32.totalorder %s27, 0
      %p237 = por %p235, %p236
      %p238 = scmp.ne.s32.totalorder %s226, %s227
      %p239 = scmp.eq.s32.totalorder %s28, 1
      %p240 = por %p238, %p239
      %p242 = scmp.ne.s32.totalorder %s227, %s241
      %p243 = scmp.eq.s32.totalorder %s28, 0
      %p244 = por %p242, %p243
      %s245 = ssub.s32 %s22, %s29
      %p246 = scmp.eq.s32.totalorder %s245, 0
      %s248 = sadd.s32 %s247, 1
      %s249 = scalar_select %p246, %s247, %s248
      %p252 = pneg %p246
      %p253 = scmp.eq.s32.totalorder %s22, 1
      %p254 = por %p252, %p253
      %p255 = scmp.ne.s32.totalorder %s247, %s250
      %p256 = scmp.eq.s32.totalorder %s22, 0
      %p257 = por %p255, %p256
      %p258 = scmp.ne.s32.totalorder %s247, %s250
      %p259 = scmp.eq.s32.totalorder %s27, 1
      %p260 = por %p258, %p259
      %p261 = scmp.ne.s32.totalorder %s250, %s251
      %p262 = scmp.eq.s32.totalorder %s27, 0
      %p263 = por %p261, %p262
      %p264 = scmp.ne.s32.totalorder %s250, %s251
      %p265 = scmp.eq.s32.totalorder %s28, 1
      %p266 = por %p264, %p265
      %p268 = scmp.ne.s32.totalorder %s251, %s267
      %p269 = scmp.eq.s32.totalorder %s28, 0
      %p270 = por %p268, %p269
      %p271 = scmp.le.s32.totalorder 1, %s22
      %p272 = scmp.lt.s32.totalorder %s22, 3
      %p273 = pnand %p271, %p272
      %p274 = pneg %p273
      // Predicated region
      $region9: #{tpu_custom_call.1} parent=5 // pred_check
        _
      $region10: #{tpu_custom_call.1} parent=5 // pred_check_branch
        %276 = sbr.rel (%p273) target = $region12
      $region11: #{tpu_custom_call.1} parent=5 // pred_region
        %s277 = ssub.s32 %s22, 1
        // Predicated region
        $region13: #{tpu_custom_call.1} parent=11 // pred_check
          %p278 = pneg %p43
        $region14: #{tpu_custom_call.1} parent=11 // pred_check_branch
          %280 = sbr.rel (%p278) target = $region16
        $region15: #{tpu_custom_call.1} parent=11 // pred_region
          _
        $region16: #{tpu_custom_call.1} parent=11 // pred_fallthru
          _
        // Predicated region
        $region17: #{tpu_custom_call.1} parent=11 // pred_check
          %p281 = pneg %p90
        $region18: #{tpu_custom_call.1} parent=11 // pred_check_branch
          %283 = sbr.rel (%p281) target = $region20
        $region19: #{tpu_custom_call.1} parent=11 // pred_region
          _
        $region20: #{tpu_custom_call.1} parent=11 // pred_fallthru
          _
        // Predicated region
        $region21: #{tpu_custom_call.1} parent=11 // pred_check
          %p284 = pneg %p111
        $region22: #{tpu_custom_call.1} parent=11 // pred_check_branch
          %286 = sbr.rel (%p284) target = $region24
        $region23: #{tpu_custom_call.1} parent=11 // pred_region
          _
        $region24: #{tpu_custom_call.1} parent=11 // pred_fallthru
          _
        // Predicated region
        $region25: #{tpu_custom_call.1} parent=11 // pred_check
          %p287 = pneg %p132
        $region26: #{tpu_custom_call.1} parent=11 // pred_check_branch
          %289 = sbr.rel (%p287) target = $region28
        $region27: #{tpu_custom_call.1} parent=11 // pred_region
          %291 = vsyncadd [#allocation3], 0
          %s293 = sshll.u32 %s4, 4
          %s294 = int_to_ptr.hbm [resolvable:$true] %s293
          %s295 = sshll.u32 [#allocation2], 4
          %s296 = int_to_ptr.vmem [resolvable:$true] %s295
          %298 = dma.hbm_to_vmem [thread:$0]  %s294, 64, %s296, [#allocation3]
        $region28: #{tpu_custom_call.1} parent=11 // pred_fallthru
          _
        // Predicated region
        $region29: #{tpu_custom_call.1} parent=11 // pred_check
          %p299 = pneg %p153
        $region30: #{tpu_custom_call.1} parent=11 // pred_check_branch
          %301 = sbr.rel (%p299) target = $region32
        $region31: #{tpu_custom_call.1} parent=11 // pred_region
          %303 = vsyncadd [#allocation6], 0
          %s304 = sshll.u32 %s5, 4
          %s305 = int_to_ptr.hbm [resolvable:$true] %s304
          %s306 = sshll.u32 [#allocation5], 4
          %s307 = int_to_ptr.vmem [resolvable:$true] %s306
          %312 = dma.hbm_to_vmem [thread:$0]  %s305, 4096, %s307, [#allocation6], 256, 256, 16
        $region32: #{tpu_custom_call.1} parent=11 // pred_fallthru
          _
        // Predicated region
        $region33: #{tpu_custom_call.1} parent=11 // pred_check
          %p313 = pneg %p174
        $region34: #{tpu_custom_call.1} parent=11 // pred_check_branch
          %315 = sbr.rel (%p313) target = $region36
        $region35: #{tpu_custom_call.1} parent=11 // pred_region
          %317 = vsyncadd [#allocation6], 0
          %s319 = sshll.u32 %s6, 4
          %s320 = int_to_ptr.hbm [resolvable:$true] %s319
          %s321 = sshll.u32 [#allocation7], 4
          %s322 = int_to_ptr.vmem [resolvable:$true] %s321
          %324 = dma.hbm_to_vmem [thread:$0]  %s320, 128, %s322, [#allocation6]
        $region36: #{tpu_custom_call.1} parent=11 // pred_fallthru
          _
        // Predicated region
        $region37: #{tpu_custom_call.1} parent=11 // pred_check
          %p325 = pneg %p195
        $region38: #{tpu_custom_call.1} parent=11 // pred_check_branch
          %327 = sbr.rel (%p325) target = $region40
        $region39: #{tpu_custom_call.1} parent=11 // pred_region
          _
        $region40: #{tpu_custom_call.1} parent=11 // pred_fallthru
          _
        // Predicated region
        $region41: #{tpu_custom_call.1} parent=11 // pred_check
          %p328 = pneg %p216
        $region42: #{tpu_custom_call.1} parent=11 // pred_check_branch
          %330 = sbr.rel (%p328) target = $region44
        $region43: #{tpu_custom_call.1} parent=11 // pred_region
          %332 = vsyncadd [#allocation9], 0
          %s333 = sshll.u32 %s8, 4
          %s334 = int_to_ptr.hbm [resolvable:$true] %s333
          %s335 = sshll.u32 [#allocation8], 4
          %s336 = int_to_ptr.vmem [resolvable:$true] %s335
          %341 = dma.hbm_to_vmem [thread:$0]  %s334, 4096, %s336, [#allocation9], 128, 128, 8
        $region44: #{tpu_custom_call.1} parent=11 // pred_fallthru
          _
        // Predicated region
        $region45: #{tpu_custom_call.1} parent=11 // pred_check
          %p342 = pneg %p237
        $region46: #{tpu_custom_call.1} parent=11 // pred_check_branch
          %344 = sbr.rel (%p342) target = $region48
        $region47: #{tpu_custom_call.1} parent=11 // pred_region
          _
        $region48: #{tpu_custom_call.1} parent=11 // pred_fallthru
          _
      $region12: #{tpu_custom_call.1} parent=5 // pred_fallthru
        _
      %p345 = scmp.lt.s32.totalorder %s22, 2
      // Predicated region
      $region49: #{tpu_custom_call.1} parent=5 // pred_check
        %p346 = pneg %p345
      $region50: #{tpu_custom_call.1} parent=5 // pred_check_branch
        %348 = sbr.rel (%p346) target = $region52
      $region51: #{tpu_custom_call.1} parent=5 // pred_region
        // Predicated region
        $region53: #{tpu_custom_call.1} parent=51 // pred_check
          %p349 = pneg %p63
        $region54: #{tpu_custom_call.1} parent=51 // pred_check_branch
          %351 = sbr.rel (%p349) target = $region56
        $region55: #{tpu_custom_call.1} parent=51 // pred_region
          %s352 = smul.u32 4, %s22
          %p353 = scmp.lt.s32.totalorder %s352, 7
          %s354 = scalar_select %p353, %s352, 7
          %s355 = smul.addr %s354, 8
          %s356 = scalar_lea.vmem %s1, %s355
          %s357 = smul.u32 4, %s22
        $region56: #{tpu_custom_call.1} parent=51 // pred_fallthru
          _
      $region52: #{tpu_custom_call.1} parent=5 // pred_fallthru
        _
      %p358 = scmp.le.s32.totalorder 1, %s22
      %p359 = scmp.lt.s32.totalorder %s22, 3
      %p360 = pnand %p358, %p359
      %p361 = pneg %p360
      // Predicated region
      $region57: #{tpu_custom_call.1} parent=5 // pred_check
        _
      $region58: #{tpu_custom_call.1} parent=5 // pred_check_branch
        %363 = sbr.rel (%p360) target = $region60
      $region59: #{tpu_custom_call.1} parent=5 // pred_region
        %s364 = ssub.s32 %s22, 1
        // Predicated region
        $region61: #{tpu_custom_call.1} parent=59 // pred_check
          %p365 = pneg %p132
        $region62: #{tpu_custom_call.1} parent=59 // pred_check_branch
          %367 = sbr.rel (%p365) target = $region64
        $region63: #{tpu_custom_call.1} parent=59 // pred_region
          %369 = dma.done [#allocation3], 64
        $region64: #{tpu_custom_call.1} parent=59 // pred_fallthru
          _
        // Predicated region
        $region65: #{tpu_custom_call.1} parent=59 // pred_check
          %p370 = pneg %p153
        $region66: #{tpu_custom_call.1} parent=59 // pred_check_branch
          %372 = sbr.rel (%p370) target = $region68
        $region67: #{tpu_custom_call.1} parent=59 // pred_region
          %374 = dma.done [#allocation6], 4096
        $region68: #{tpu_custom_call.1} parent=59 // pred_fallthru
          _
        // Predicated region
        $region69: #{tpu_custom_call.1} parent=59 // pred_check
          %p375 = pneg %p174
        $region70: #{tpu_custom_call.1} parent=59 // pred_check_branch
          %377 = sbr.rel (%p375) target = $region72
        $region71: #{tpu_custom_call.1} parent=59 // pred_region
          %379 = dma.done [#allocation6], 128
        $region72: #{tpu_custom_call.1} parent=59 // pred_fallthru
          _
        // Predicated region
        $region73: #{tpu_custom_call.1} parent=59 // pred_check
          %p380 = pneg %p216
        $region74: #{tpu_custom_call.1} parent=59 // pred_check_branch
          %382 = sbr.rel (%p380) target = $region76
        $region75: #{tpu_custom_call.1} parent=59 // pred_region
          %384 = dma.done [#allocation9], 4096
        $region76: #{tpu_custom_call.1} parent=59 // pred_fallthru
          _
        %p385 = pneg %p43
        %p386 = pneg %p40
        %s387 = smul.u32 4, %s27
        %p388 = scmp.lt.s32.totalorder %s387, 7
        %s389 = scalar_select %p388, %s387, 7
        %s390 = smul.addr %s389, 8
        %s391 = scalar_lea.vmem %s1, %s390
        %p392 = pneg %p69
        %p393 = pneg %p66
        %p394 = pneg %p90
        %p395 = pneg %p87
        %p396 = pneg %p111
        %p397 = pneg %p108
        %p398 = pneg %p132
        %p399 = pneg %p129
        %p400 = pneg %p153
        %p401 = pneg %p150
        %p402 = pneg %p174
        %p403 = pneg %p171
        %p404 = pneg %p195
        %p405 = pneg %p192
        %p406 = pneg %p216
        %p407 = pneg %p213
        %p408 = pneg %p237
        %p409 = pneg %p234
        %p410 = pneg %p263
        %p411 = pneg %p260
        %s412 = sand.u32 %s250, 1
        %s413 = scalar_lea.sflag [#allocation4], %s412
        %s414 = sand.u32 %s250, 1
        %s415 = scalar_lea.vmem [#allocation10], %s414
        %s416 = smul.u32 4, %s27
        %p417 = scmp.lt.s32.totalorder %s416, 7
        %s418 = scalar_select %p417, %s416, 7
        %s419 = smul.addr %s418, 8
        %s420 = scalar_lea.vmem %s1, %s419
        %s421 = smul.u32 4, %s27
        %v422 = vld [vmem:[%s420] sm:$0xff]
        %v423 = vld [vmem:[%s420 + $0x8] sm:$0xff]
        %v424 = vld [vmem:[%s420 + $0x10] sm:$0xff]
        %v425 = vld [vmem:[%s420 + $0x18] sm:$0xff]
        %v426 = vld [vmem:[%s0] sm:$0xff]
        %v427 = vld [vmem:[%s0 + $0x8] sm:$0xff]
        %v428 = vld [vmem:[%s0 + $0x10] sm:$0xff]
        %v429 = vld [vmem:[%s0 + $0x18] sm:$0xff]
        %v430 = vld [vmem:[#allocation2] sm:$0xf]
        %v431 = vld [vmem:[#allocation7] sm:$0x77]
        %v432 = vld [vmem:[%s2] sm:$0xff]
        %v433 = vld [vmem:[%s2 + $0x8] sm:$0xff]
        %v434 = vld [vmem:[%s2 + $0x10] sm:$0xff]
        %v435 = vld [vmem:[%s2 + $0x18] sm:$0xff]
        %vm436 = vcmask 261120
        %v438 = vsel %vm436, %v422, 0
        %v441 = vsel %vm436, %v423, 0
        %v444 = vsel %vm436, %v424, 0
        %v447 = vsel %vm436, %v425, 0
        %449 = vmatpush.msra.mxu0 0.0
        %450 = vmatpush.msra.mxu0 0.0
        %451 = vmatpush.msra.mxu0 0.0
        %452 = vmatpush.msra.mxu0 0.0
        %453 = vmatpush.msra.mxu0 0.0
        %454 = vmatpush.msra.mxu0 0.0
        %455 = vmatpush.msra.mxu0 0.0
        %456 = vmatpush.msra.mxu0 0.0
        %457 = vmatpush.msra.mxu0 0.0
        %458 = vmatpush.msra.mxu0 0.0
        %459 = vmatpush.msra.mxu0 0.0
        %460 = vmatpush.msra.mxu0 0.0
        %461 = vmatpush.msra.mxu0 %v435
        %462 = vmatpush.msra.mxu0 %v434
        %463 = vmatpush.msra.mxu0 %v433
        %464 = vmatpush.msra.mxu0 %v432
        %465 = vmatmul.f32.gmra.mxu0 %v438
        %v466 = vpop.f32.mrf.mxu0
        %v467 = vadd.f32 0.0, %v466
        %468 = vmatmul.f32.gmra.mxu0 %v441
        %v469 = vpop.f32.mrf.mxu0
        %v470 = vadd.f32 0.0, %v469
        %471 = vmatmul.f32.gmra.mxu0 %v444
        %v472 = vpop.f32.mrf.mxu0
        %v473 = vadd.f32 0.0, %v472
        %474 = vmatmul.f32.gmra.mxu0 %v447
        %v475 = vpop.f32.mrf.mxu0
        %v476 = vadd.f32 0.0, %v475
        %477 = vdwg.mxu0
        %v478 = vld [vmem:[%s3] sm:$0xff]
        %v479 = vld [vmem:[%s3 + $0x8] sm:$0xff]
        %v480 = vld [vmem:[%s3 + $0x10] sm:$0xff]
        %v481 = vld [vmem:[%s3 + $0x18] sm:$0xff]
        %v482 = vperm.slane %v430, 1
        %483 = vmatpush.msra.mxu0 0.0
        %484 = vmatpush.msra.mxu0 0.0
        %485 = vmatpush.msra.mxu0 0.0
        %486 = vmatpush.msra.mxu0 0.0
        %487 = vmatpush.msra.mxu0 0.0
        %488 = vmatpush.msra.mxu0 0.0
        %489 = vmatpush.msra.mxu0 0.0
        %490 = vmatpush.msra.mxu0 0.0
        %491 = vmatpush.msra.mxu0 0.0
        %492 = vmatpush.msra.mxu0 0.0
        %493 = vmatpush.msra.mxu0 0.0
        %494 = vmatpush.msra.mxu0 0.0
        %495 = vmatpush.msra.mxu0 %v481
        %496 = vmatpush.msra.mxu0 %v480
        %497 = vmatpush.msra.mxu0 %v479
        %498 = vmatpush.msra.mxu0 %v478
        %499 = vmatmul.f32.gmra.mxu0 %v438
        %v500 = vpop.f32.mrf.mxu0
        %v501 = vadd.f32 %v482, %v500
        %502 = vmatmul.f32.gmra.mxu0 %v441
        %v503 = vpop.f32.mrf.mxu0
        %v504 = vadd.f32 %v482, %v503
        %505 = vmatmul.f32.gmra.mxu0 %v444
        %v506 = vpop.f32.mrf.mxu0
        %v507 = vadd.f32 %v482, %v506
        %508 = vmatmul.f32.gmra.mxu0 %v447
        %v509 = vpop.f32.mrf.mxu0
        %v510 = vadd.f32 %v482, %v509
        %511 = vdwg.mxu0
        %v512 = vperm.slane %v430, 0
        %v514 = vsel %vm436, %v426, 0
        %v517 = vsel %vm436, %v427, 0
        %v520 = vsel %vm436, %v428, 0
        %v523 = vsel %vm436, %v429, 0
        %525 = vmatpush.msra.mxu0 0.0
        %526 = vmatpush.msra.mxu0 0.0
        %527 = vmatpush.msra.mxu0 0.0
        %528 = vmatpush.msra.mxu0 0.0
        %529 = vmatpush.msra.mxu0 0.0
        %530 = vmatpush.msra.mxu0 0.0
        %531 = vmatpush.msra.mxu0 0.0
        %532 = vmatpush.msra.mxu0 0.0
        %533 = vmatpush.msra.mxu0 0.0
        %534 = vmatpush.msra.mxu0 0.0
        %535 = vmatpush.msra.mxu0 0.0
        %536 = vmatpush.msra.mxu0 0.0
        %537 = vmatpush.msra.mxu0 %v476
        %538 = vmatpush.msra.mxu0 %v473
        %539 = vmatpush.msra.mxu0 %v470
        %540 = vmatpush.msra.mxu0 %v467
        %541 = vmatmul.f32.gmra.mxu0 %v514
        %v542 = vpop.f32.mrf.mxu0
        %v543 = vadd.f32 %v512, %v542
        %544 = vmatmul.f32.gmra.mxu0 %v517
        %v545 = vpop.f32.mrf.mxu0
        %v546 = vadd.f32 %v512, %v545
        %547 = vmatmul.f32.gmra.mxu0 %v520
        %v548 = vpop.f32.mrf.mxu0
        %v549 = vadd.f32 %v512, %v548
        %550 = vmatmul.f32.gmra.mxu0 %v523
        %v551 = vpop.f32.mrf.mxu0
        %v552 = vadd.f32 %v512, %v551
        %553 = vdwg.mxu0
        %v554 = vmax.f32 %v543, 0.0
        %v555 = vmax.f32 %v546, 0.0
        %v556 = vmax.f32 %v549, 0.0
        %v557 = vmax.f32 %v552, 0.0
        %v558 = vadd.f32 %v554, %v501
        %v559 = vadd.f32 %v555, %v504
        %v560 = vadd.f32 %v556, %v507
        %v561 = vadd.f32 %v557, %v510
        %v562 = vperm.slane %v430, 2
        %v563 = vmul.f32 %v558, %v562
        %v564 = vmul.f32 %v559, %v562
        %v565 = vmul.f32 %v560, %v562
        %v566 = vmul.f32 %v561, %v562
        %v567 = vperm.slane %v430, 3
        %v568 = vadd.f32 %v563, %v567
        %v569 = vadd.f32 %v564, %v567
        %v570 = vadd.f32 %v565, %v567
        %v571 = vadd.f32 %v566, %v567
        %v572 = vmax.f32 %v568, 0.0
        %v573 = vmax.f32 %v569, 0.0
        %v574 = vmax.f32 %v570, 0.0
        %v575 = vmax.f32 %v571, 0.0
        %v576 = vld [vmem:[#allocation5] sm:$0xff]
        %v577 = vld [vmem:[#allocation5 + $0x8] sm:$0xff]
        %v578 = vld [vmem:[#allocation5 + $0x10] sm:$0xff]
        %v579 = vld [vmem:[#allocation5 + $0x18] sm:$0xff]
        %v580 = vld [vmem:[#allocation5 + $0x20] sm:$0xff]
        %v581 = vld [vmem:[#allocation5 + $0x28] sm:$0xff]
        %v582 = vld [vmem:[#allocation5 + $0x30] sm:$0xff]
        %v583 = vld [vmem:[#allocation5 + $0x38] sm:$0xff]
        %v584 = vld [vmem:[#allocation5 + $0x40] sm:$0xff]
        %v585 = vld [vmem:[#allocation5 + $0x48] sm:$0xff]
        %v586 = vld [vmem:[#allocation5 + $0x50] sm:$0xff]
        %v587 = vld [vmem:[#allocation5 + $0x58] sm:$0xff]
        %v588 = vld [vmem:[#allocation5 + $0x60] sm:$0xff]
        %v589 = vld [vmem:[#allocation5 + $0x68] sm:$0xff]
        %v590 = vld [vmem:[#allocation5 + $0x70] sm:$0xff]
        %v591 = vld [vmem:[#allocation5 + $0x78] sm:$0xff]
        %v592 = vld [vmem:[#allocation5 + $0x80] sm:$0xff]
        %v593 = vld [vmem:[#allocation5 + $0x88] sm:$0xff]
        %v594 = vld [vmem:[#allocation5 + $0x90] sm:$0xff]
        %v595 = vld [vmem:[#allocation5 + $0x98] sm:$0xff]
        %v596 = vld [vmem:[#allocation5 + $0xa0] sm:$0xff]
        %v597 = vld [vmem:[#allocation5 + $0xa8] sm:$0xff]
        %v598 = vld [vmem:[#allocation5 + $0xb0] sm:$0xff]
        %v599 = vld [vmem:[#allocation5 + $0xb8] sm:$0xff]
        %v600 = vld [vmem:[#allocation5 + $0xc0] sm:$0xff]
        %v601 = vld [vmem:[#allocation5 + $0xc8] sm:$0xff]
        %v602 = vld [vmem:[#allocation5 + $0xd0] sm:$0xff]
        %v603 = vld [vmem:[#allocation5 + $0xd8] sm:$0xff]
        %v604 = vld [vmem:[#allocation5 + $0xe0] sm:$0xff]
        %v605 = vld [vmem:[#allocation5 + $0xe8] sm:$0xff]
        %v606 = vld [vmem:[#allocation5 + $0xf0] sm:$0xff]
        %v607 = vld [vmem:[#allocation5 + $0xf8] sm:$0xff]
        %608 = vmatpush.msra.mxu0 %v606
        %609 = vmatpush.msra.mxu0 %v604
        %610 = vmatpush.msra.mxu0 %v602
        %611 = vmatpush.msra.mxu0 %v600
        %612 = vmatpush.msra.mxu0 %v598
        %613 = vmatpush.msra.mxu0 %v596
        %614 = vmatpush.msra.mxu0 %v594
        %615 = vmatpush.msra.mxu0 %v592
        %616 = vmatpush.msra.mxu0 %v590
        %617 = vmatpush.msra.mxu0 %v588
        %618 = vmatpush.msra.mxu0 %v586
        %619 = vmatpush.msra.mxu0 %v584
        %620 = vmatpush.msra.mxu0 %v582
        %621 = vmatpush.msra.mxu0 %v580
        %622 = vmatpush.msra.mxu0 %v578
        %623 = vmatpush.msra.mxu0 %v576
        %624 = vmatmul.f32.gmra.mxu0 %v572
        %v625 = vpop.f32.mrf.mxu0
        %v626 = vadd.f32 0.0, %v625
        %627 = vmatmul.f32.gmra.mxu0 %v573
        %v628 = vpop.f32.mrf.mxu0
        %v629 = vadd.f32 0.0, %v628
        %630 = vmatmul.f32.gmra.mxu0 %v574
        %v631 = vpop.f32.mrf.mxu0
        %v632 = vadd.f32 0.0, %v631
        %633 = vmatmul.f32.gmra.mxu0 %v575
        %v634 = vpop.f32.mrf.mxu0
        %v635 = vadd.f32 0.0, %v634
        %636 = vdwg.mxu0
        %637 = vmatpush.msra.mxu0 %v607
        %638 = vmatpush.msra.mxu0 %v605
        %639 = vmatpush.msra.mxu0 %v603
        %640 = vmatpush.msra.mxu0 %v601
        %641 = vmatpush.msra.mxu0 %v599
        %642 = vmatpush.msra.mxu0 %v597
        %643 = vmatpush.msra.mxu0 %v595
        %644 = vmatpush.msra.mxu0 %v593
        %645 = vmatpush.msra.mxu0 %v591
        %646 = vmatpush.msra.mxu0 %v589
        %647 = vmatpush.msra.mxu0 %v587
        %648 = vmatpush.msra.mxu0 %v585
        %649 = vmatpush.msra.mxu0 %v583
        %650 = vmatpush.msra.mxu0 %v581
        %651 = vmatpush.msra.mxu0 %v579
        %652 = vmatpush.msra.mxu0 %v577
        %653 = vmatmul.f32.gmra.mxu0 %v572
        %v654 = vpop.f32.mrf.mxu0
        %v655 = vadd.f32 0.0, %v654
        %656 = vmatmul.f32.gmra.mxu0 %v573
        %v657 = vpop.f32.mrf.mxu0
        %v658 = vadd.f32 0.0, %v657
        %659 = vmatmul.f32.gmra.mxu0 %v574
        %v660 = vpop.f32.mrf.mxu0
        %v661 = vadd.f32 0.0, %v660
        %662 = vmatmul.f32.gmra.mxu0 %v575
        %v663 = vpop.f32.mrf.mxu0
        %v664 = vadd.f32 0.0, %v663
        %665 = vdwg.mxu0
        %v667 = vperm.slane %v431, 0
        %v668 = vperm.slane %v431, 4
        %v671 = vperm.slane %v667, 0
        %v672 = vperm.slane %v668, 0
        %673 = vmatpush.msra.mxu0 0.0
        %674 = vmatpush.msra.mxu0 0.0
        %675 = vmatpush.msra.mxu0 0.0
        %676 = vmatpush.msra.mxu0 0.0
        %677 = vmatpush.msra.mxu0 0.0
        %678 = vmatpush.msra.mxu0 0.0
        %679 = vmatpush.msra.mxu0 0.0
        %680 = vmatpush.msra.mxu0 0.0
        %681 = vmatpush.msra.mxu0 0.0
        %682 = vmatpush.msra.mxu0 0.0
        %683 = vmatpush.msra.mxu0 0.0
        %684 = vmatpush.msra.mxu0 0.0
        %685 = vmatpush.msra.mxu0 %v635
        %686 = vmatpush.msra.mxu0 %v632
        %687 = vmatpush.msra.mxu0 %v629
        %688 = vmatpush.msra.mxu0 %v626
        %689 = vmatmul.f32.gmra.mxu0 %v514
        %v690 = vpop.f32.mrf.mxu0
        %v691 = vadd.f32 %v671, %v690
        %692 = vmatmul.f32.gmra.mxu0 %v517
        %v693 = vpop.f32.mrf.mxu0
        %v694 = vadd.f32 %v671, %v693
        %695 = vmatmul.f32.gmra.mxu0 %v520
        %v696 = vpop.f32.mrf.mxu0
        %v697 = vadd.f32 %v671, %v696
        %698 = vmatmul.f32.gmra.mxu0 %v523
        %v699 = vpop.f32.mrf.mxu0
        %v700 = vadd.f32 %v671, %v699
        %701 = vdwg.mxu0
        %702 = vmatpush.msra.mxu0 0.0
        %703 = vmatpush.msra.mxu0 0.0
        %704 = vmatpush.msra.mxu0 0.0
        %705 = vmatpush.msra.mxu0 0.0
        %706 = vmatpush.msra.mxu0 0.0
        %707 = vmatpush.msra.mxu0 0.0
        %708 = vmatpush.msra.mxu0 0.0
        %709 = vmatpush.msra.mxu0 0.0
        %710 = vmatpush.msra.mxu0 0.0
        %711 = vmatpush.msra.mxu0 0.0
        %712 = vmatpush.msra.mxu0 0.0
        %713 = vmatpush.msra.mxu0 0.0
        %714 = vmatpush.msra.mxu0 %v664
        %715 = vmatpush.msra.mxu0 %v661
        %716 = vmatpush.msra.mxu0 %v658
        %717 = vmatpush.msra.mxu0 %v655
        %718 = vmatmul.f32.gmra.mxu0 %v514
        %v719 = vpop.f32.mrf.mxu0
        %v720 = vadd.f32 %v672, %v719
        %721 = vmatmul.f32.gmra.mxu0 %v517
        %v722 = vpop.f32.mrf.mxu0
        %v723 = vadd.f32 %v672, %v722
        %724 = vmatmul.f32.gmra.mxu0 %v520
        %v725 = vpop.f32.mrf.mxu0
        %v726 = vadd.f32 %v672, %v725
        %727 = vmatmul.f32.gmra.mxu0 %v523
        %v728 = vpop.f32.mrf.mxu0
        %v729 = vadd.f32 %v672, %v728
        %730 = vdwg.mxu0
        %v731 = vmax.f32 %v691, 0.0
        %v732 = vmax.f32 %v720, 0.0
        %v733 = vmax.f32 %v694, 0.0
        %v734 = vmax.f32 %v723, 0.0
        %v735 = vmax.f32 %v697, 0.0
        %v736 = vmax.f32 %v726, 0.0
        %v737 = vmax.f32 %v700, 0.0
        %v738 = vmax.f32 %v729, 0.0
        %v739 = vld [vmem:[%s7] sm:$0x1]
        %v741 = vsel %vm436, %v739, 0
        %743 = vmatpush.msra.mxu0 0.0
        %744 = vmatpush.msra.mxu0 0.0
        %745 = vmatpush.msra.mxu0 0.0
        %746 = vmatpush.msra.mxu0 0.0
        %747 = vmatpush.msra.mxu0 0.0
        %748 = vmatpush.msra.mxu0 0.0
        %749 = vmatpush.msra.mxu0 0.0
        %750 = vmatpush.msra.mxu0 0.0
        %751 = vmatpush.msra.mxu0 0.0
        %752 = vmatpush.msra.mxu0 0.0
        %753 = vmatpush.msra.mxu0 0.0
        %754 = vmatpush.msra.mxu0 0.0
        %755 = vmatpush.msra.mxu0 %v737
        %756 = vmatpush.msra.mxu0 %v735
        %757 = vmatpush.msra.mxu0 %v733
        %758 = vmatpush.msra.mxu0 %v731
        %759 = vmatmul.f32.gmra.mxu0 %v741
        %v760 = vpop.f32.mrf.mxu0
        %v761 = vadd.f32 0.0, %v760
        %762 = vdwg.mxu0
        %763 = vmatpush.msra.mxu0 0.0
        %764 = vmatpush.msra.mxu0 0.0
        %765 = vmatpush.msra.mxu0 0.0
        %766 = vmatpush.msra.mxu0 0.0
        %767 = vmatpush.msra.mxu0 0.0
        %768 = vmatpush.msra.mxu0 0.0
        %769 = vmatpush.msra.mxu0 0.0
        %770 = vmatpush.msra.mxu0 0.0
        %771 = vmatpush.msra.mxu0 0.0
        %772 = vmatpush.msra.mxu0 0.0
        %773 = vmatpush.msra.mxu0 0.0
        %774 = vmatpush.msra.mxu0 0.0
        %775 = vmatpush.msra.mxu0 %v738
        %776 = vmatpush.msra.mxu0 %v736
        %777 = vmatpush.msra.mxu0 %v734
        %778 = vmatpush.msra.mxu0 %v732
        %779 = vmatmul.f32.gmra.mxu0 %v741
        %v780 = vpop.f32.mrf.mxu0
        %v781 = vadd.f32 0.0, %v780
        %782 = vdwg.mxu0
        %v783 = vperm.slane %v431, 1
        %v784 = vperm.slane %v431, 5
        %v787 = vmul.f32 %v761, %v783
        %v788 = vmul.f32 %v781, %v784
        %v789 = vperm.slane %v431, 2
        %v790 = vperm.slane %v431, 6
        %v793 = vadd.f32 %v787, %v789
        %v794 = vadd.f32 %v788, %v790
        %v795 = vmax.f32 %v793, 0.0
        %v796 = vmax.f32 %v794, 0.0
        %v797 = vld [vmem:[#allocation8] sm:$0xff]
        %v798 = vld [vmem:[#allocation8 + $0x8] sm:$0xff]
        %v799 = vld [vmem:[#allocation8 + $0x10] sm:$0xff]
        %v800 = vld [vmem:[#allocation8 + $0x18] sm:$0xff]
        %v801 = vld [vmem:[#allocation8 + $0x20] sm:$0xff]
        %v802 = vld [vmem:[#allocation8 + $0x28] sm:$0xff]
        %v803 = vld [vmem:[#allocation8 + $0x30] sm:$0xff]
        %v804 = vld [vmem:[#allocation8 + $0x38] sm:$0xff]
        %v805 = vld [vmem:[#allocation8 + $0x40] sm:$0xff]
        %v806 = vld [vmem:[#allocation8 + $0x48] sm:$0xff]
        %v807 = vld [vmem:[#allocation8 + $0x50] sm:$0xff]
        %v808 = vld [vmem:[#allocation8 + $0x58] sm:$0xff]
        %v809 = vld [vmem:[#allocation8 + $0x60] sm:$0xff]
        %v810 = vld [vmem:[#allocation8 + $0x68] sm:$0xff]
        %v811 = vld [vmem:[#allocation8 + $0x70] sm:$0xff]
        %v812 = vld [vmem:[#allocation8 + $0x78] sm:$0xff]
        %v813 = vld [vmem:[#allocation8 + $0x80] sm:$0xff]
        %v814 = vld [vmem:[#allocation8 + $0x88] sm:$0xff]
        %v815 = vld [vmem:[#allocation8 + $0x90] sm:$0xff]
        %v816 = vld [vmem:[#allocation8 + $0x98] sm:$0xff]
        %v817 = vld [vmem:[#allocation8 + $0xa0] sm:$0xff]
        %v818 = vld [vmem:[#allocation8 + $0xa8] sm:$0xff]
        %v819 = vld [vmem:[#allocation8 + $0xb0] sm:$0xff]
        %v820 = vld [vmem:[#allocation8 + $0xb8] sm:$0xff]
        %v821 = vld [vmem:[#allocation8 + $0xc0] sm:$0xff]
        %v822 = vld [vmem:[#allocation8 + $0xc8] sm:$0xff]
        %v823 = vld [vmem:[#allocation8 + $0xd0] sm:$0xff]
        %v824 = vld [vmem:[#allocation8 + $0xd8] sm:$0xff]
        %v825 = vld [vmem:[#allocation8 + $0xe0] sm:$0xff]
        %v826 = vld [vmem:[#allocation8 + $0xe8] sm:$0xff]
        %v827 = vld [vmem:[#allocation8 + $0xf0] sm:$0xff]
        %v828 = vld [vmem:[#allocation8 + $0xf8] sm:$0xff]
        %v829 = vld [vmem:[%s9] sm:$0x1]
        %830 = vmatpush.msra.mxu0 %v812
        %831 = vmatpush.msra.mxu0 %v811
        %832 = vmatpush.msra.mxu0 %v810
        %833 = vmatpush.msra.mxu0 %v809
        %834 = vmatpush.msra.mxu0 %v808
        %835 = vmatpush.msra.mxu0 %v807
        %836 = vmatpush.msra.mxu0 %v806
        %837 = vmatpush.msra.mxu0 %v805
        %838 = vmatpush.msra.mxu0 %v804
        %839 = vmatpush.msra.mxu0 %v803
        %840 = vmatpush.msra.mxu0 %v802
        %841 = vmatpush.msra.mxu0 %v801
        %842 = vmatpush.msra.mxu0 %v800
        %843 = vmatpush.msra.mxu0 %v799
        %844 = vmatpush.msra.mxu0 %v798
        %845 = vmatpush.msra.mxu0 %v797
        %846 = vmatmul.f32.gmra.mxu0 %v795
        %v847 = vpop.f32.mrf.mxu0
        %v848 = vadd.f32 %v829, %v847
        %849 = vdwg.mxu0
        %850 = vmatpush.msra.mxu0 %v828
        %851 = vmatpush.msra.mxu0 %v827
        %852 = vmatpush.msra.mxu0 %v826
        %853 = vmatpush.msra.mxu0 %v825
        %854 = vmatpush.msra.mxu0 %v824
        %855 = vmatpush.msra.mxu0 %v823
        %856 = vmatpush.msra.mxu0 %v822
        %857 = vmatpush.msra.mxu0 %v821
        %858 = vmatpush.msra.mxu0 %v820
        %859 = vmatpush.msra.mxu0 %v819
        %860 = vmatpush.msra.mxu0 %v818
        %861 = vmatpush.msra.mxu0 %v817
        %862 = vmatpush.msra.mxu0 %v816
        %863 = vmatpush.msra.mxu0 %v815
        %864 = vmatpush.msra.mxu0 %v814
        %865 = vmatpush.msra.mxu0 %v813
        %866 = vmatmul.f32.gmra.mxu0 %v796
        %v867 = vpop.f32.mrf.mxu0
        %v868 = vadd.f32 %v848, %v867
        %869 = vdwg.mxu0
        %870 = vst [vmem:[%s415] sm:$0x1] %v868
        %s871 = sand.u32 %s250, 1
        %s872 = scalar_lea.sflag [#allocation4], %s871
        %s873 = sand.u32 %s250, 1
        %s874 = scalar_lea.vmem [#allocation10], %s873
        // Predicated region
        $region77: #{tpu_custom_call.1} parent=59 // pred_check
          %p875 = pneg %p260
        $region78: #{tpu_custom_call.1} parent=59 // pred_check_branch
          %877 = sbr.rel (%p875) target = $region80
        $region79: #{tpu_custom_call.1} parent=59 // pred_region
          %879 = vsyncadd %s872, 0
          %s880 = scalar_lea.hbm %s10, %s27
          %s882 = sshll.u32 %s874, 4
          %s883 = int_to_ptr.vmem [resolvable:$true] %s882
          %s884 = sshll.u32 %s880, 4
          %s885 = int_to_ptr.hbm [resolvable:$true] %s884
          %887 = dma.vmem_to_hbm [thread:$0]  %s883, 16, %s885, %s872
        $region80: #{tpu_custom_call.1} parent=59 // pred_fallthru
          _
      $region60: #{tpu_custom_call.1} parent=5 // pred_fallthru
        _
      %p888 = scmp.le.s32.totalorder 2, %s22
      // Predicated region
      $region81: #{tpu_custom_call.1} parent=5 // pred_check
        %p889 = pneg %p888
      $region82: #{tpu_custom_call.1} parent=5 // pred_check_branch
        %891 = sbr.rel (%p889) target = $region84
      $region83: #{tpu_custom_call.1} parent=5 // pred_region
        %s892 = ssub.s32 %s22, 2
        // Predicated region
        $region85: #{tpu_custom_call.1} parent=83 // pred_check
          %p893 = pneg %p266
        $region86: #{tpu_custom_call.1} parent=83 // pred_check_branch
          %895 = sbr.rel (%p893) target = $region88
        $region87: #{tpu_custom_call.1} parent=83 // pred_region
          %s896 = sand.u32 %s251, 1
          %s897 = scalar_lea.sflag [#allocation4], %s896
          %s898 = sand.u32 %s251, 1
          %s899 = scalar_lea.vmem [#allocation10], %s898
          %901 = dma.done %s897, 16
        $region88: #{tpu_custom_call.1} parent=83 // pred_fallthru
          _
      $region84: #{tpu_custom_call.1} parent=5 // pred_fallthru
        _
    $region6: #{tpu_custom_call.1} parent=1 // loop_footer
      %s26 = sadd.s32 1, %s22
    $region7: #{tpu_custom_call.1} parent=1 // loop_footer_branch
      %21 = sbr.rel target = $region3
    $region8: #{tpu_custom_call.1} parent=1 // loop_exit
      _
    %902 = vsyncpa [#allocation3], 1
    %s903 = scalar_lea.sflag [#allocation3], 1
    %904 = vsyncpa %s903, 1
    %905 = vsyncpa [#allocation6], 1
    %906 = vsyncpa [#allocation9], 1
    %907 = vsyncpa [#allocation4], 1
    %s908 = scalar_lea.sflag [#allocation4], 1
    %909 = vsyncpa %s908, 1

</llo_original>
